<compile_context>
chip_gen: v7x
topology: tpu7x:2x2x1
jax: 0.10.0
libtpu: 0.0.40
codegen_flags: <defaults>
</compile_context>

<pallas_src>
import jax
import jax.numpy as jnp
from jax.experimental import pallas as pl
from jax.experimental.pallas import tpu as pltpu

EMBED_DIM = 64
BLOCK_SIZE = 4
NUM_GLOBAL = 2
NEG_INF = -1e30


def sparse_attn_kernel(x_ref, wq_ref, bq_ref, wk_ref, bk_ref, wv_ref, bv_ref,
                       wo_ref, bo_ref, bias_ref, o_ref):
    x = x_ref[...]                                           # (BT, D)
    D = x.shape[-1]

    # Three separate (BT, D) @ (D, D) projections — results land lane-aligned,
    # no slicing of a fused 192-wide output.
    q = jnp.dot(x, wq_ref[...], preferred_element_type=jnp.float32) + bq_ref[0]
    k = jnp.dot(x, wk_ref[...], preferred_element_type=jnp.float32) + bk_ref[0]
    v = jnp.dot(x, wv_ref[...], preferred_element_type=jnp.float32) + bv_ref[0]

    # One dense (BT, BT) score matmul with batch folded into M/N; contraction
    # on the last dims of both operands (no materialised K transpose).
    scale = 1.0 / (D ** 0.5)
    scores = jax.lax.dot_general(
        q, k, (((1,), (1,)), ((), ())),
        preferred_element_type=jnp.float32) * scale          # (BT, BT)

    # Static sparsity (band | global) & same-batch mask, precomputed in the
    # wrapper as an additive 0 / -1e30 bias: a single vadd here.
    scores = scores + bias_ref[...]

    # Softmax in f32.  Normalise by dividing only the (BT, 1) sum vector.
    m = jnp.max(scores, axis=-1, keepdims=True)
    e = jnp.exp(scores - m)
    s = jnp.sum(e, axis=-1, keepdims=True)
    weights = e * (1.0 / s)

    attn = jnp.dot(weights, v, preferred_element_type=jnp.float32)   # (BT, D)
    out = jnp.dot(attn, wo_ref[...], preferred_element_type=jnp.float32) + bo_ref[0]
    o_ref[...] = out.astype(o_ref.dtype)


def _attention_bias(B, T, dtype=jnp.float32):
    """Additive mask bias of shape (B*T, B*T): 0 where attention is allowed,
    -1e30 elsewhere.  Allowed = same batch AND (block-local band OR global row).
    The global-row full softmax reproduces the PyTorch overwrite exactly."""
    BT = B * T
    t = jnp.arange(BT, dtype=jnp.int32)
    batch = t // T
    tok = t % T
    same_batch = batch[:, None] == batch[None, :]
    blk_start = (tok // BLOCK_SIZE) * BLOCK_SIZE
    local = ((tok[None, :] >= blk_start[:, None] - BLOCK_SIZE)
             & (tok[None, :] < blk_start[:, None] + 2 * BLOCK_SIZE))
    glob = tok[:, None] < NUM_GLOBAL
    mask = same_batch & (local | glob)
    return jnp.where(mask, 0.0, NEG_INF).astype(dtype)


def sparse_self_attention(x, wq, bq, wk, bk, wv, bv, wo, bo):
    B, T, D = x.shape
    BT = B * T

    x2 = x.reshape(BT, D)
    bias = _attention_bias(B, T)
    row = lambda b: b.reshape(1, D)

    out2 = pl.pallas_call(
        sparse_attn_kernel,
        out_shape=jax.ShapeDtypeStruct((BT, D), x.dtype),
        grid_spec=pltpu.PrefetchScalarGridSpec(
            num_scalar_prefetch=0,
            grid=(1,),                                       # single invocation
            in_specs=[
                pl.BlockSpec((BT, D), lambda i: (0, 0)),     # x (batch folded)
                pl.BlockSpec((D, D), lambda i: (0, 0)),      # Wq
                pl.BlockSpec((1, D), lambda i: (0, 0)),      # bq
                pl.BlockSpec((D, D), lambda i: (0, 0)),      # Wk
                pl.BlockSpec((1, D), lambda i: (0, 0)),      # bk
                pl.BlockSpec((D, D), lambda i: (0, 0)),      # Wv
                pl.BlockSpec((1, D), lambda i: (0, 0)),      # bv
                pl.BlockSpec((D, D), lambda i: (0, 0)),      # Wo
                pl.BlockSpec((1, D), lambda i: (0, 0)),      # bo
                pl.BlockSpec((BT, BT), lambda i: (0, 0)),    # additive mask bias
            ],
            out_specs=pl.BlockSpec((BT, D), lambda i: (0, 0)),
        ),
        compiler_params=pltpu.CompilerParams(
            dimension_semantics=("arbitrary",)),
    )(x2, wq, row(bq), wk, row(bk), wv, row(bv), wo, row(bo), bias)

    return out2.reshape(B, T, D)


def reference(x, wq, bq, wk, bk, wv, bv, wo, bo):
    """Pure-JAX reference mirroring the PyTorch forward."""
    B, T, D = x.shape
    q = x @ wq + bq
    k = x @ wk + bk
    v = x @ wv + bv
    out = jnp.zeros_like(x)
    for i in range(0, T, BLOCK_SIZE):
        end = min(i + BLOCK_SIZE, T)
        left = max(i - BLOCK_SIZE, 0)
        right = min(i + 2 * BLOCK_SIZE, T)
        s = jnp.einsum('bqd,bkd->bqk', q[:, i:end], k[:, left:right]) / D ** 0.5
        w = jax.nn.softmax(s, axis=-1)
        out = out.at[:, i:end].set(jnp.einsum('bqk,bkd->bqd', w, v[:, left:right]))
    gs = jnp.einsum('bqd,bkd->bqk', q[:, :NUM_GLOBAL], k) / D ** 0.5
    gw = jax.nn.softmax(gs, axis=-1)
    out = out.at[:, :NUM_GLOBAL].set(jnp.einsum('bqk,bkd->bqd', gw, v))
    return out @ wo + bo


if __name__ == "__main__":
    B, T, D = 2, 16, EMBED_DIM
    key = jax.random.PRNGKey(0)
    keys = jax.random.split(key, 9)
    bound = 1.0 / (D ** 0.5)   # PyTorch nn.Linear default init bound

    x = jax.random.normal(keys[0], (B, T, D), dtype=jnp.float32)
    wq = jax.random.uniform(keys[1], (D, D), jnp.float32, -bound, bound)
    bq = jax.random.uniform(keys[2], (D,), jnp.float32, -bound, bound)
    wk = jax.random.uniform(keys[3], (D, D), jnp.float32, -bound, bound)
    bk = jax.random.uniform(keys[4], (D,), jnp.float32, -bound, bound)
    wv = jax.random.uniform(keys[5], (D, D), jnp.float32, -bound, bound)
    bv = jax.random.uniform(keys[6], (D,), jnp.float32, -bound, bound)
    wo = jax.random.uniform(keys[7], (D, D), jnp.float32, -bound, bound)
    bo = jax.random.uniform(keys[8], (D,), jnp.float32, -bound, bound)

    out = sparse_self_attention(x, wq, bq, wk, bk, wv, bv, wo, bo)
    out = jax.block_until_ready(out)

    ref = reference(x, wq, bq, wk, bk, wv, bv, wo, bo)
    assert out.shape == (B, T, D)
    assert jnp.allclose(out, ref, atol=1e-5, rtol=1e-5), \
        f"max abs err {jnp.max(jnp.abs(out - ref))}"

    print("KERNEL_OK")
</pallas_src>

<mosaic_0001>
module attributes {stable_mosaic.version = 11 : i64} {
  func.func @sparse_attn_kernel(%arg0: i32, %arg1: memref<32x64xf32, #tpu.memory_space<vmem>>, %arg2: memref<64x64xf32, #tpu.memory_space<vmem>>, %arg3: memref<1x64xf32, #tpu.memory_space<vmem>>, %arg4: memref<64x64xf32, #tpu.memory_space<vmem>>, %arg5: memref<1x64xf32, #tpu.memory_space<vmem>>, %arg6: memref<64x64xf32, #tpu.memory_space<vmem>>, %arg7: memref<1x64xf32, #tpu.memory_space<vmem>>, %arg8: memref<64x64xf32, #tpu.memory_space<vmem>>, %arg9: memref<1x64xf32, #tpu.memory_space<vmem>>, %arg10: memref<32x32xf32, #tpu.memory_space<vmem>>, %arg11: memref<32x64xf32, #tpu.memory_space<vmem>>) attributes {dimension_semantics = [#tpu.dimension_semantics<arbitrary>], iteration_bounds = array<i64: 1>, scalar_prefetch = 0 : i64, scratch_operands = 0 : i64, tpu.core_type = #tpu.core_type<tc>, window_params = [{pipeline_mode = #tpu.pipeline_mode<synchronous>, transform_indices = @transform_0, window_bounds = array<i64: 32, 64>}, {pipeline_mode = #tpu.pipeline_mode<synchronous>, transform_indices = @transform_1, window_bounds = array<i64: 64, 64>}, {pipeline_mode = #tpu.pipeline_mode<synchronous>, transform_indices = @transform_2, window_bounds = array<i64: 1, 64>}, {pipeline_mode = #tpu.pipeline_mode<synchronous>, transform_indices = @transform_3, window_bounds = array<i64: 64, 64>}, {pipeline_mode = #tpu.pipeline_mode<synchronous>, transform_indices = @transform_4, window_bounds = array<i64: 1, 64>}, {pipeline_mode = #tpu.pipeline_mode<synchronous>, transform_indices = @transform_5, window_bounds = array<i64: 64, 64>}, {pipeline_mode = #tpu.pipeline_mode<synchronous>, transform_indices = @transform_6, window_bounds = array<i64: 1, 64>}, {pipeline_mode = #tpu.pipeline_mode<synchronous>, transform_indices = @transform_7, window_bounds = array<i64: 64, 64>}, {pipeline_mode = #tpu.pipeline_mode<synchronous>, transform_indices = @transform_8, window_bounds = array<i64: 1, 64>}, {pipeline_mode = #tpu.pipeline_mode<synchronous>, transform_indices = @transform_9, window_bounds = array<i64: 32, 32>}, {pipeline_mode = #tpu.pipeline_mode<synchronous>, transform_indices = @transform_10, window_bounds = array<i64: 32, 64>}]} {
    %c0 = arith.constant 0 : index
    %c0_0 = arith.constant 0 : index
    %0 = vector.load %arg1[%c0, %c0_0] : memref<32x64xf32, #tpu.memory_space<vmem>>, vector<32x64xf32>
    %c0_1 = arith.constant 0 : index
    %c0_2 = arith.constant 0 : index
    %1 = vector.load %arg2[%c0_1, %c0_2] : memref<64x64xf32, #tpu.memory_space<vmem>>, vector<64x64xf32>
    %cst = arith.constant dense<0.000000e+00> : vector<32x64xf32>
    %2 = tpu.matmul %0, %1, %cst {dimension_numbers = #tpu.dot_dimension_numbers<[1], [0], [0], [1], [0, 0, 1, 1], [], []>} : vector<32x64xf32>, vector<64x64xf32>, vector<32x64xf32> -> vector<32x64xf32>
    %c0_3 = arith.constant 0 : index
    %c0_4 = arith.constant 0 : index
    %3 = vector.load %arg3[%c0_3, %c0_4] : memref<1x64xf32, #tpu.memory_space<vmem>>, vector<1x64xf32>
    %4 = vector.shape_cast %3 : vector<1x64xf32> to vector<64xf32>
    %5 = vector.shape_cast %4 : vector<64xf32> to vector<1x64xf32>
    %6 = vector.broadcast %5 : vector<1x64xf32> to vector<32x64xf32>
    %7 = arith.addf %2, %6 : vector<32x64xf32>
    %c0_5 = arith.constant 0 : index
    %c0_6 = arith.constant 0 : index
    %8 = vector.load %arg4[%c0_5, %c0_6] : memref<64x64xf32, #tpu.memory_space<vmem>>, vector<64x64xf32>
    %cst_7 = arith.constant dense<0.000000e+00> : vector<32x64xf32>
    %9 = tpu.matmul %0, %8, %cst_7 {dimension_numbers = #tpu.dot_dimension_numbers<[1], [0], [0], [1], [0, 0, 1, 1], [], []>} : vector<32x64xf32>, vector<64x64xf32>, vector<32x64xf32> -> vector<32x64xf32>
    %c0_8 = arith.constant 0 : index
    %c0_9 = arith.constant 0 : index
    %10 = vector.load %arg5[%c0_8, %c0_9] : memref<1x64xf32, #tpu.memory_space<vmem>>, vector<1x64xf32>
    %11 = vector.shape_cast %10 : vector<1x64xf32> to vector<64xf32>
    %12 = vector.shape_cast %11 : vector<64xf32> to vector<1x64xf32>
    %13 = vector.broadcast %12 : vector<1x64xf32> to vector<32x64xf32>
    %14 = arith.addf %9, %13 : vector<32x64xf32>
    %c0_10 = arith.constant 0 : index
    %c0_11 = arith.constant 0 : index
    %15 = vector.load %arg6[%c0_10, %c0_11] : memref<64x64xf32, #tpu.memory_space<vmem>>, vector<64x64xf32>
    %cst_12 = arith.constant dense<0.000000e+00> : vector<32x64xf32>
    %16 = tpu.matmul %0, %15, %cst_12 {dimension_numbers = #tpu.dot_dimension_numbers<[1], [0], [0], [1], [0, 0, 1, 1], [], []>} : vector<32x64xf32>, vector<64x64xf32>, vector<32x64xf32> -> vector<32x64xf32>
    %c0_13 = arith.constant 0 : index
    %c0_14 = arith.constant 0 : index
    %17 = vector.load %arg7[%c0_13, %c0_14] : memref<1x64xf32, #tpu.memory_space<vmem>>, vector<1x64xf32>
    %18 = vector.shape_cast %17 : vector<1x64xf32> to vector<64xf32>
    %19 = vector.shape_cast %18 : vector<64xf32> to vector<1x64xf32>
    %20 = vector.broadcast %19 : vector<1x64xf32> to vector<32x64xf32>
    %21 = arith.addf %16, %20 : vector<32x64xf32>
    %cst_15 = arith.constant dense<0.000000e+00> : vector<32x32xf32>
    %22 = tpu.matmul %7, %14, %cst_15 {dimension_numbers = #tpu.dot_dimension_numbers<[1], [1], [0], [0], [0, 0, 1, 0], [], []>} : vector<32x64xf32>, vector<32x64xf32>, vector<32x32xf32> -> vector<32x32xf32>
    %cst_16 = arith.constant 1.250000e-01 : f32
    %23 = vector.broadcast %cst_16 : f32 to vector<32x32xf32>
    %24 = arith.mulf %22, %23 : vector<32x32xf32>
    %c0_17 = arith.constant 0 : index
    %c0_18 = arith.constant 0 : index
    %25 = vector.load %arg10[%c0_17, %c0_18] : memref<32x32xf32, #tpu.memory_space<vmem>>, vector<32x32xf32>
    %26 = arith.addf %24, %25 : vector<32x32xf32>
    %cst_19 = arith.constant dense<0xFF800000> : vector<32xf32>
    %27 = vector.multi_reduction <maximumf>, %26, %cst_19 [1] : vector<32x32xf32> to vector<32xf32>
    %28 = vector.shape_cast %27 : vector<32xf32> to vector<32x1xf32>
    %29 = vector.broadcast %28 : vector<32x1xf32> to vector<32x32xf32>
    %30 = arith.subf %26, %29 : vector<32x32xf32>
    %31 = math.exp %30 : vector<32x32xf32>
    %cst_20 = arith.constant dense<0.000000e+00> : vector<32xf32>
    %32 = vector.multi_reduction <add>, %31, %cst_20 [1] : vector<32x32xf32> to vector<32xf32>
    %33 = vector.shape_cast %32 : vector<32xf32> to vector<32x1xf32>
    %cst_21 = arith.constant 1.000000e+00 : f32
    %34 = vector.broadcast %cst_21 : f32 to vector<32x1xf32>
    %35 = arith.divf %34, %33 : vector<32x1xf32>
    %36 = vector.broadcast %35 : vector<32x1xf32> to vector<32x32xf32>
    %37 = arith.mulf %31, %36 : vector<32x32xf32>
    %cst_22 = arith.constant dense<0.000000e+00> : vector<32x64xf32>
    %38 = tpu.matmul %37, %21, %cst_22 {dimension_numbers = #tpu.dot_dimension_numbers<[1], [0], [0], [1], [0, 0, 1, 1], [], []>} : vector<32x32xf32>, vector<32x64xf32>, vector<32x64xf32> -> vector<32x64xf32>
    %c0_23 = arith.constant 0 : index
    %c0_24 = arith.constant 0 : index
    %39 = vector.load %arg8[%c0_23, %c0_24] : memref<64x64xf32, #tpu.memory_space<vmem>>, vector<64x64xf32>
    %cst_25 = arith.constant dense<0.000000e+00> : vector<32x64xf32>
    %40 = tpu.matmul %38, %39, %cst_25 {dimension_numbers = #tpu.dot_dimension_numbers<[1], [0], [0], [1], [0, 0, 1, 1], [], []>} : vector<32x64xf32>, vector<64x64xf32>, vector<32x64xf32> -> vector<32x64xf32>
    %c0_26 = arith.constant 0 : index
    %c0_27 = arith.constant 0 : index
    %41 = vector.load %arg9[%c0_26, %c0_27] : memref<1x64xf32, #tpu.memory_space<vmem>>, vector<1x64xf32>
    %42 = vector.shape_cast %41 : vector<1x64xf32> to vector<64xf32>
    %43 = vector.shape_cast %42 : vector<64xf32> to vector<1x64xf32>
    %44 = vector.broadcast %43 : vector<1x64xf32> to vector<32x64xf32>
    %45 = arith.addf %40, %44 : vector<32x64xf32>
    %c0_28 = arith.constant 0 : index
    %c0_29 = arith.constant 0 : index
    %46 = vector.load %arg11[%c0_28, %c0_29] : memref<32x64xf32, #tpu.memory_space<vmem>>, vector<32x64xf32>
    tpu.vector_store %arg11[%c0_28, %c0_29], %45 {strides = array<i32>} : memref<32x64xf32, #tpu.memory_space<vmem>>, vector<32x64xf32>,
    return
  }
  func.func @transform_0(%arg0: i32) -> (i32, i32) {
    %c0_i32 = arith.constant 0 : i32
    %c0_i32_0 = arith.constant 0 : i32
    %c0_i32_1 = arith.constant 0 : i32
    return %c0_i32, %c0_i32_0 : i32, i32
  }
  func.func @transform_1(%arg0: i32) -> (i32, i32) {
    %c0_i32 = arith.constant 0 : i32
    %c0_i32_0 = arith.constant 0 : i32
    %c0_i32_1 = arith.constant 0 : i32
    return %c0_i32, %c0_i32_0 : i32, i32
  }
  func.func @transform_2(%arg0: i32) -> (i32, i32) {
    %c0_i32 = arith.constant 0 : i32
    %c0_i32_0 = arith.constant 0 : i32
    %c0_i32_1 = arith.constant 0 : i32
    return %c0_i32, %c0_i32_0 : i32, i32
  }
  func.func @transform_3(%arg0: i32) -> (i32, i32) {
    %c0_i32 = arith.constant 0 : i32
    %c0_i32_0 = arith.constant 0 : i32
    %c0_i32_1 = arith.constant 0 : i32
    return %c0_i32, %c0_i32_0 : i32, i32
  }
  func.func @transform_4(%arg0: i32) -> (i32, i32) {
    %c0_i32 = arith.constant 0 : i32
    %c0_i32_0 = arith.constant 0 : i32
    %c0_i32_1 = arith.constant 0 : i32
    return %c0_i32, %c0_i32_0 : i32, i32
  }
  func.func @transform_5(%arg0: i32) -> (i32, i32) {
    %c0_i32 = arith.constant 0 : i32
    %c0_i32_0 = arith.constant 0 : i32
    %c0_i32_1 = arith.constant 0 : i32
    return %c0_i32, %c0_i32_0 : i32, i32
  }
  func.func @transform_6(%arg0: i32) -> (i32, i32) {
    %c0_i32 = arith.constant 0 : i32
    %c0_i32_0 = arith.constant 0 : i32
    %c0_i32_1 = arith.constant 0 : i32
    return %c0_i32, %c0_i32_0 : i32, i32
  }
  func.func @transform_7(%arg0: i32) -> (i32, i32) {
    %c0_i32 = arith.constant 0 : i32
    %c0_i32_0 = arith.constant 0 : i32
    %c0_i32_1 = arith.constant 0 : i32
    return %c0_i32, %c0_i32_0 : i32, i32
  }
  func.func @transform_8(%arg0: i32) -> (i32, i32) {
    %c0_i32 = arith.constant 0 : i32
    %c0_i32_0 = arith.constant 0 : i32
    %c0_i32_1 = arith.constant 0 : i32
    return %c0_i32, %c0_i32_0 : i32, i32
  }
  func.func @transform_9(%arg0: i32) -> (i32, i32) {
    %c0_i32 = arith.constant 0 : i32
    %c0_i32_0 = arith.constant 0 : i32
    %c0_i32_1 = arith.constant 0 : i32
    return %c0_i32, %c0_i32_0 : i32, i32
  }
  func.func @transform_10(%arg0: i32) -> (i32, i32) {
    %c0_i32 = arith.constant 0 : i32
    %c0_i32_0 = arith.constant 0 : i32
    %c0_i32_1 = arith.constant 0 : i32
    return %c0_i32, %c0_i32_0 : i32, i32
  }
}

</mosaic_0001>

<llo_original>
// kernel: tpu_custom_call.1
$region0: #{tpu_custom_call.1}
  #allocation0 [shape = 'u32[]', space=smem, size = 0x4, offset = 0x4, fixed_abs, tag = 'smem constant byte address 0x4 - core index']
  #allocation1 [shape = 'u32[144,128]{1,0:T(1,128)}', space=vmem, size = 0x12000, scoped, tag = 'internal scratch']
  %s0 = inlined_call_operand.hbm [shape: f32[32,64], index: 0, kind: input, shape index: {}]
  %s1 = inlined_call_operand.hbm [shape: f32[64,64], index: 1, kind: input, shape index: {}]
  %s2 = inlined_call_operand.vmem [shape: f32[1,64], index: 2, kind: input, shape index: {}]
  %s3 = inlined_call_operand.hbm [shape: f32[64,64], index: 3, kind: input, shape index: {}]
  %s4 = inlined_call_operand.vmem [shape: f32[1,64], index: 4, kind: input, shape index: {}]
  %s5 = inlined_call_operand.hbm [shape: f32[64,64], index: 5, kind: input, shape index: {}]
  %s6 = inlined_call_operand.hbm [shape: f32[1,64], index: 6, kind: input, shape index: {}]
  %s7 = inlined_call_operand.hbm [shape: f32[64,64], index: 7, kind: input, shape index: {}]
  %s8 = inlined_call_operand.hbm [shape: f32[1,64], index: 8, kind: input, shape index: {}]
  %s9 = inlined_call_operand.vmem [shape: f32[32,32], index: 9, kind: input, shape index: {}]
  %s10 = inlined_call_operand.hbm [shape: f32[32,64], index: 10, kind: output, shape index: {}]
  %s11 = sld [smem:[#allocation0]]
  $region78: #{tpu_custom_call.1} parent=0
    _
  %s13 = ssub.s32 1, %s11
  %s14 = scalar_select 0, %s13, %s11
  $region1: #{tpu_custom_call.1} parent=0
    #allocation2 [shape = 'u8[16384]{0}', space=vmem, size = 0x4000, scoped, tag = 'input window, operand 0, single buffered']
    #allocation3 [shape = 's32[1]{0}', space=sflag, size = 0x4, scoped, tag = 'scoped memory for tpu_custom_call.1']
    #allocation4 [shape = 's32[1]{0}', space=sflag, size = 0x4, scoped, tag = 'scoped memory for tpu_custom_call.1']
    #allocation5 [shape = 'u8[32768]{0}', space=vmem, size = 0x8000, scoped, tag = 'input window, operand 1, single buffered']
    #allocation6 [shape = 's32[1]{0}', space=sflag, size = 0x4, scoped, tag = 'scoped memory for tpu_custom_call.1']
    #allocation7 [shape = 'u8[32768]{0}', space=vmem, size = 0x8000, scoped, tag = 'input window, operand 3, single buffered']
    #allocation8 [shape = 'u8[32768]{0}', space=vmem, size = 0x8000, scoped, tag = 'input window, operand 5, single buffered']
    #allocation9 [shape = 's32[1]{0}', space=sflag, size = 0x4, scoped, tag = 'scoped memory for tpu_custom_call.1']
    #allocation10 [shape = 'u8[512]{0}', space=vmem, size = 0x400, scoped, tag = 'input window, operand 6, single buffered']
    #allocation11 [shape = 'u8[32768]{0}', space=vmem, size = 0x8000, scoped, tag = 'input window, operand 7, single buffered']
    #allocation12 [shape = 's32[1]{0}', space=sflag, size = 0x4, scoped, tag = 'scoped memory for tpu_custom_call.1']
    #allocation13 [shape = 'u8[512]{0}', space=vmem, size = 0x400, scoped, tag = 'input window, operand 8, single buffered']
    #allocation14 [shape = 'u8[16384]{0}', space=vmem, size = 0x4000, scoped, tag = 'output window, operand 0, single buffered']
    %15 = vsyncpa [#allocation3], 0
    %16 = vsyncpa [#allocation6], 0
    %17 = vsyncpa [#allocation9], 0
    %18 = vsyncpa [#allocation12], 0
    %19 = vsyncpa [#allocation4], 0
    // Predicated region
    $region2: #{tpu_custom_call.1} parent=1 // pred_check
      _
    $region3: #{tpu_custom_call.1} parent=1 // pred_check_branch
      %21 = sbr.rel (0) target = $region5
    $region4: #{tpu_custom_call.1} parent=1 // pred_region
      %s23 = ssub.s32 512, 512
      %24 = vsyncadd [#allocation3], %s23
      %s25 = sshll.u32 [#allocation2], 4
      %s26 = int_to_ptr.vmem [resolvable:$true] %s25
      %31 = dma.hbm_to_vmem [thread:$0]  %s0, 512, %s26, [#allocation3], 128, 128, 8
    $region5: #{tpu_custom_call.1} parent=1 // pred_fallthru
      _
    // Predicated region
    $region6: #{tpu_custom_call.1} parent=1 // pred_check
      _
    $region7: #{tpu_custom_call.1} parent=1 // pred_check_branch
      %33 = sbr.rel (0) target = $region9
    $region8: #{tpu_custom_call.1} parent=1 // pred_region
      %s35 = ssub.s32 1024, 1024
      %36 = vsyncadd [#allocation6], %s35
      %s37 = sshll.u32 [#allocation5], 4
      %s38 = int_to_ptr.vmem [resolvable:$true] %s37
      %43 = dma.hbm_to_vmem [thread:$0]  %s1, 1024, %s38, [#allocation6], 128, 128, 8
    $region9: #{tpu_custom_call.1} parent=1 // pred_fallthru
      _
    // Predicated region
    $region10: #{tpu_custom_call.1} parent=1 // pred_check
      _
    $region11: #{tpu_custom_call.1} parent=1 // pred_check_branch
      %45 = sbr.rel (0) target = $region13
    $region12: #{tpu_custom_call.1} parent=1 // pred_region
      _
    $region13: #{tpu_custom_call.1} parent=1 // pred_fallthru
      _
    // Predicated region
    $region14: #{tpu_custom_call.1} parent=1 // pred_check
      _
    $region15: #{tpu_custom_call.1} parent=1 // pred_check_branch
      %47 = sbr.rel (0) target = $region17
    $region16: #{tpu_custom_call.1} parent=1 // pred_region
      %s49 = ssub.s32 1024, 1024
      %50 = vsyncadd [#allocation6], %s49
      %s51 = sshll.u32 [#allocation7], 4
      %s52 = int_to_ptr.vmem [resolvable:$true] %s51
      %57 = dma.hbm_to_vmem [thread:$0]  %s3, 1024, %s52, [#allocation6], 128, 128, 8
    $region17: #{tpu_custom_call.1} parent=1 // pred_fallthru
      _
    // Predicated region
    $region18: #{tpu_custom_call.1} parent=1 // pred_check
      _
    $region19: #{tpu_custom_call.1} parent=1 // pred_check_branch
      %59 = sbr.rel (0) target = $region21
    $region20: #{tpu_custom_call.1} parent=1 // pred_region
      _
    $region21: #{tpu_custom_call.1} parent=1 // pred_fallthru
      _
    // Predicated region
    $region22: #{tpu_custom_call.1} parent=1 // pred_check
      _
    $region23: #{tpu_custom_call.1} parent=1 // pred_check_branch
      %61 = sbr.rel (0) target = $region25
    $region24: #{tpu_custom_call.1} parent=1 // pred_region
      %s63 = ssub.s32 1024, 1024
      %64 = vsyncadd [#allocation9], %s63
      %s65 = sshll.u32 [#allocation8], 4
      %s66 = int_to_ptr.vmem [resolvable:$true] %s65
      %71 = dma.hbm_to_vmem [thread:$0]  %s5, 1024, %s66, [#allocation9], 128, 128, 8
    $region25: #{tpu_custom_call.1} parent=1 // pred_fallthru
      _
    // Predicated region
    $region26: #{tpu_custom_call.1} parent=1 // pred_check
      _
    $region27: #{tpu_custom_call.1} parent=1 // pred_check_branch
      %73 = sbr.rel (0) target = $region29
    $region28: #{tpu_custom_call.1} parent=1 // pred_region
      %s75 = ssub.s32 16, 16
      %76 = vsyncadd [#allocation9], %s75
      %s78 = sshll.u32 [#allocation10], 4
      %s79 = int_to_ptr.vmem [resolvable:$true] %s78
      %81 = dma.hbm_to_vmem [thread:$0]  %s6, 16, %s79, [#allocation9]
    $region29: #{tpu_custom_call.1} parent=1 // pred_fallthru
      _
    // Predicated region
    $region30: #{tpu_custom_call.1} parent=1 // pred_check
      _
    $region31: #{tpu_custom_call.1} parent=1 // pred_check_branch
      %83 = sbr.rel (0) target = $region33
    $region32: #{tpu_custom_call.1} parent=1 // pred_region
      %s85 = ssub.s32 1024, 1024
      %86 = vsyncadd [#allocation12], %s85
      %s87 = sshll.u32 [#allocation11], 4
      %s88 = int_to_ptr.vmem [resolvable:$true] %s87
      %93 = dma.hbm_to_vmem [thread:$0]  %s7, 1024, %s88, [#allocation12], 128, 128, 8
    $region33: #{tpu_custom_call.1} parent=1 // pred_fallthru
      _
    // Predicated region
    $region34: #{tpu_custom_call.1} parent=1 // pred_check
      _
    $region35: #{tpu_custom_call.1} parent=1 // pred_check_branch
      %95 = sbr.rel (0) target = $region37
    $region36: #{tpu_custom_call.1} parent=1 // pred_region
      %s97 = ssub.s32 16, 16
      %98 = vsyncadd [#allocation12], %s97
      %s100 = sshll.u32 [#allocation13], 4
      %s101 = int_to_ptr.vmem [resolvable:$true] %s100
      %103 = dma.hbm_to_vmem [thread:$0]  %s8, 16, %s101, [#allocation12]
    $region37: #{tpu_custom_call.1} parent=1 // pred_fallthru
      _
    // Predicated region
    $region38: #{tpu_custom_call.1} parent=1 // pred_check
      _
    $region39: #{tpu_custom_call.1} parent=1 // pred_check_branch
      %105 = sbr.rel (0) target = $region41
    $region40: #{tpu_custom_call.1} parent=1 // pred_region
      _
    $region41: #{tpu_custom_call.1} parent=1 // pred_fallthru
      _
    // Predicated region
    $region42: #{tpu_custom_call.1} parent=1 // pred_check
      _
    $region43: #{tpu_custom_call.1} parent=1 // pred_check_branch
      %107 = sbr.rel (0) target = $region45
    $region44: #{tpu_custom_call.1} parent=1 // pred_region
      %108 = dma.done [#allocation3], 512
    $region45: #{tpu_custom_call.1} parent=1 // pred_fallthru
      _
    // Predicated region
    $region46: #{tpu_custom_call.1} parent=1 // pred_check
      _
    $region47: #{tpu_custom_call.1} parent=1 // pred_check_branch
      %110 = sbr.rel (0) target = $region49
    $region48: #{tpu_custom_call.1} parent=1 // pred_region
      %111 = dma.done [#allocation6], 1024
    $region49: #{tpu_custom_call.1} parent=1 // pred_fallthru
      _
    // Predicated region
    $region50: #{tpu_custom_call.1} parent=1 // pred_check
      _
    $region51: #{tpu_custom_call.1} parent=1 // pred_check_branch
      %113 = sbr.rel (0) target = $region53
    $region52: #{tpu_custom_call.1} parent=1 // pred_region
      %114 = dma.done [#allocation6], 1024
    $region53: #{tpu_custom_call.1} parent=1 // pred_fallthru
      _
    // Predicated region
    $region54: #{tpu_custom_call.1} parent=1 // pred_check
      _
    $region55: #{tpu_custom_call.1} parent=1 // pred_check_branch
      %116 = sbr.rel (0) target = $region57
    $region56: #{tpu_custom_call.1} parent=1 // pred_region
      %117 = dma.done [#allocation9], 1024
    $region57: #{tpu_custom_call.1} parent=1 // pred_fallthru
      _
    // Predicated region
    $region58: #{tpu_custom_call.1} parent=1 // pred_check
      _
    $region59: #{tpu_custom_call.1} parent=1 // pred_check_branch
      %119 = sbr.rel (0) target = $region61
    $region60: #{tpu_custom_call.1} parent=1 // pred_region
      %120 = dma.done [#allocation9], 16
    $region61: #{tpu_custom_call.1} parent=1 // pred_fallthru
      _
    // Predicated region
    $region62: #{tpu_custom_call.1} parent=1 // pred_check
      _
    $region63: #{tpu_custom_call.1} parent=1 // pred_check_branch
      %122 = sbr.rel (0) target = $region65
    $region64: #{tpu_custom_call.1} parent=1 // pred_region
      %123 = dma.done [#allocation12], 1024
    $region65: #{tpu_custom_call.1} parent=1 // pred_fallthru
      _
    // Predicated region
    $region66: #{tpu_custom_call.1} parent=1 // pred_check
      _
    $region67: #{tpu_custom_call.1} parent=1 // pred_check_branch
      %125 = sbr.rel (0) target = $region69
    $region68: #{tpu_custom_call.1} parent=1 // pred_region
      %126 = dma.done [#allocation12], 16
    $region69: #{tpu_custom_call.1} parent=1 // pred_fallthru
      _
    %v127 = vld [vmem:[#allocation2] sm:$0xff]
    %v128 = vld [vmem:[#allocation2 + $0x8] sm:$0xff]
    %v129 = vld [vmem:[#allocation2 + $0x10] sm:$0xff]
    %v130 = vld [vmem:[#allocation2 + $0x18] sm:$0xff]
    %v131 = vld [vmem:[#allocation5] sm:$0xff]
    %v132 = vld [vmem:[#allocation5 + $0x8] sm:$0xff]
    %v133 = vld [vmem:[#allocation5 + $0x10] sm:$0xff]
    %v134 = vld [vmem:[#allocation5 + $0x18] sm:$0xff]
    %v135 = vld [vmem:[#allocation5 + $0x20] sm:$0xff]
    %v136 = vld [vmem:[#allocation5 + $0x28] sm:$0xff]
    %v137 = vld [vmem:[#allocation5 + $0x30] sm:$0xff]
    %v138 = vld [vmem:[#allocation5 + $0x38] sm:$0xff]
    %v139 = vld [vmem:[%s2] sm:$0x1]
    %v141 = vlaneseq
    %v142 = vshrl.u32 %v141, 7
    %v143 = vsub.s32 0, %v142
    %v144 = vrot.slane %v139, %v143
    %vm146 = vcmask 523264
    %v148 = vsel %vm146, %v127, 0
    %v151 = vsel %vm146, %v128, 0
    %v154 = vsel %vm146, %v129, 0
    %v157 = vsel %vm146, %v130, 0
    %159 = vmatprep.subr.mxu0 0.0
    %160 = vmatpush1.msra.mxu0 %v131
    %161 = vmatprep.subr.mxu0 0.0
    %162 = vmatpush1.msra.mxu0 %v132
    %163 = vmatprep.subr.mxu0 0.0
    %164 = vmatpush1.msra.mxu0 %v133
    %165 = vmatprep.subr.mxu0 0.0
    %166 = vmatpush1.msra.mxu0 %v134
    %167 = vmatprep.subr.mxu0 0.0
    %168 = vmatpush1.msra.mxu0 %v135
    %169 = vmatprep.subr.mxu0 0.0
    %170 = vmatpush1.msra.mxu0 %v136
    %171 = vmatprep.subr.mxu0 0.0
    %172 = vmatpush1.msra.mxu0 %v137
    %173 = vmatprep.subr.mxu0 0.0
    %174 = vmatpush1.msra.mxu0 %v138
    %175 = vmatprep.subr.mxu0 0.0
    %176 = vmatpush1.msra.mxu0 0.0
    %177 = vmatprep.subr.mxu0 0.0
    %178 = vmatpush1.msra.mxu0 0.0
    %179 = vmatprep.subr.mxu0 0.0
    %180 = vmatpush1.msra.mxu0 0.0
    %181 = vmatprep.subr.mxu0 0.0
    %182 = vmatpush1.msra.mxu0 0.0
    %183 = vmatprep.subr.mxu0 0.0
    %184 = vmatpush1.msra.mxu0 0.0
    %185 = vmatprep.subr.mxu0 0.0
    %186 = vmatpush1.msra.mxu0 0.0
    %187 = vmatprep.subr.mxu0 0.0
    %188 = vmatpush1.msra.mxu0 0.0
    %189 = vmatprep.subr.mxu0 0.0
    %190 = vmatpush1.msra.mxu0 0.0
    %191 = vmatprep.subr.mxu0 0.0
    %192 = vmatpush1.msra.mxu0 0.0
    %193 = vmatprep.subr.mxu0 0.0
    %194 = vmatpush1.msra.mxu0 0.0
    %195 = vmatprep.subr.mxu0 0.0
    %196 = vmatpush1.msra.mxu0 0.0
    %197 = vmatprep.subr.mxu0 0.0
    %198 = vmatpush1.msra.mxu0 0.0
    %199 = vmatprep.subr.mxu0 0.0
    %200 = vmatpush1.msra.mxu0 0.0
    %201 = vmatprep.subr.mxu0 0.0
    %202 = vmatpush1.msra.mxu0 0.0
    %203 = vmatprep.subr.mxu0 0.0
    %204 = vmatpush1.msra.mxu0 0.0
    %205 = vmatprep.subr.mxu0 0.0
    %206 = vmatpush1.msra.mxu0 0.0
    %207 = vmatprep.subr.mxu0 0.0
    %208 = vmatpush1.msra.mxu0 0.0
    %209 = vmatprep.subr.mxu0 0.0
    %210 = vmatpush1.msra.mxu0 0.0
    %211 = vmatprep.subr.mxu0 0.0
    %212 = vmatpush1.msra.mxu0 0.0
    %213 = vmatprep.subr.mxu0 0.0
    %214 = vmatpush1.msra.mxu0 0.0
    %215 = vmatprep.subr.mxu0 0.0
    %216 = vmatpush1.msra.mxu0 0.0
    %217 = vmatprep.subr.mxu0 0.0
    %218 = vmatpush1.msra.mxu0 0.0
    %219 = vmatprep.subr.mxu0 0.0
    %220 = vmatpush1.msra.mxu0 0.0
    %221 = vmatprep.subr.mxu0 0.0
    %222 = vmatpush1.msra.mxu0 0.0
    %223 = vmatprep.mubr.f32.mxu0 0.0
    %224 = vmatmul.mubr.f32.gmra.mrb[0].mxu0 %v148
    %v225 = vpop.f32.mrb[0].mxu0
    %v226 = vadd.f32 %v144, %v225
    %v227 = vpop.f32.mrb[0].mxu0
    %228 = vmatprep.mubr.f32.mxu0 0.0
    %229 = vmatmul.mubr.f32.gmra.mrb[0].mxu0 %v151
    %v230 = vpop.f32.mrb[0].mxu0
    %v231 = vadd.f32 %v144, %v230
    %v232 = vpop.f32.mrb[0].mxu0
    %233 = vmatprep.mubr.f32.mxu0 0.0
    %234 = vmatmul.mubr.f32.gmra.mrb[0].mxu0 %v154
    %v235 = vpop.f32.mrb[0].mxu0
    %v236 = vadd.f32 %v144, %v235
    %v237 = vpop.f32.mrb[0].mxu0
    %238 = vmatprep.mubr.f32.mxu0 0.0
    %239 = vmatmul.mubr.f32.gmra.mrb[0].mxu0 %v157
    %v240 = vpop.f32.mrb[0].mxu0
    %v241 = vadd.f32 %v144, %v240
    %v242 = vpop.f32.mrb[0].mxu0
    %243 = vdwg.mxu0
    %v244 = vld [vmem:[#allocation7] sm:$0xff]
    %v245 = vld [vmem:[#allocation7 + $0x8] sm:$0xff]
    %v246 = vld [vmem:[#allocation7 + $0x10] sm:$0xff]
    %v247 = vld [vmem:[#allocation7 + $0x18] sm:$0xff]
    %v248 = vld [vmem:[#allocation7 + $0x20] sm:$0xff]
    %v249 = vld [vmem:[#allocation7 + $0x28] sm:$0xff]
    %v250 = vld [vmem:[#allocation7 + $0x30] sm:$0xff]
    %v251 = vld [vmem:[#allocation7 + $0x38] sm:$0xff]
    %v252 = vld [vmem:[%s4] sm:$0x1]
    %v254 = vlaneseq
    %v255 = vshrl.u32 %v254, 7
    %v256 = vsub.s32 0, %v255
    %v257 = vrot.slane %v252, %v256
    %259 = vmatprep.subr.mxu0 0.0
    %260 = vmatpush1.msra.mxu0 %v244
    %261 = vmatprep.subr.mxu0 0.0
    %262 = vmatpush1.msra.mxu0 %v245
    %263 = vmatprep.subr.mxu0 0.0
    %264 = vmatpush1.msra.mxu0 %v246
    %265 = vmatprep.subr.mxu0 0.0
    %266 = vmatpush1.msra.mxu0 %v247
    %267 = vmatprep.subr.mxu0 0.0
    %268 = vmatpush1.msra.mxu0 %v248
    %269 = vmatprep.subr.mxu0 0.0
    %270 = vmatpush1.msra.mxu0 %v249
    %271 = vmatprep.subr.mxu0 0.0
    %272 = vmatpush1.msra.mxu0 %v250
    %273 = vmatprep.subr.mxu0 0.0
    %274 = vmatpush1.msra.mxu0 %v251
    %275 = vmatprep.subr.mxu0 0.0
    %276 = vmatpush1.msra.mxu0 0.0
    %277 = vmatprep.subr.mxu0 0.0
    %278 = vmatpush1.msra.mxu0 0.0
    %279 = vmatprep.subr.mxu0 0.0
    %280 = vmatpush1.msra.mxu0 0.0
    %281 = vmatprep.subr.mxu0 0.0
    %282 = vmatpush1.msra.mxu0 0.0
    %283 = vmatprep.subr.mxu0 0.0
    %284 = vmatpush1.msra.mxu0 0.0
    %285 = vmatprep.subr.mxu0 0.0
    %286 = vmatpush1.msra.mxu0 0.0
    %287 = vmatprep.subr.mxu0 0.0
    %288 = vmatpush1.msra.mxu0 0.0
    %289 = vmatprep.subr.mxu0 0.0
    %290 = vmatpush1.msra.mxu0 0.0
    %291 = vmatprep.subr.mxu0 0.0
    %292 = vmatpush1.msra.mxu0 0.0
    %293 = vmatprep.subr.mxu0 0.0
    %294 = vmatpush1.msra.mxu0 0.0
    %295 = vmatprep.subr.mxu0 0.0
    %296 = vmatpush1.msra.mxu0 0.0
    %297 = vmatprep.subr.mxu0 0.0
    %298 = vmatpush1.msra.mxu0 0.0
    %299 = vmatprep.subr.mxu0 0.0
    %300 = vmatpush1.msra.mxu0 0.0
    %301 = vmatprep.subr.mxu0 0.0
    %302 = vmatpush1.msra.mxu0 0.0
    %303 = vmatprep.subr.mxu0 0.0
    %304 = vmatpush1.msra.mxu0 0.0
    %305 = vmatprep.subr.mxu0 0.0
    %306 = vmatpush1.msra.mxu0 0.0
    %307 = vmatprep.subr.mxu0 0.0
    %308 = vmatpush1.msra.mxu0 0.0
    %309 = vmatprep.subr.mxu0 0.0
    %310 = vmatpush1.msra.mxu0 0.0
    %311 = vmatprep.subr.mxu0 0.0
    %312 = vmatpush1.msra.mxu0 0.0
    %313 = vmatprep.subr.mxu0 0.0
    %314 = vmatpush1.msra.mxu0 0.0
    %315 = vmatprep.subr.mxu0 0.0
    %316 = vmatpush1.msra.mxu0 0.0
    %317 = vmatprep.subr.mxu0 0.0
    %318 = vmatpush1.msra.mxu0 0.0
    %319 = vmatprep.subr.mxu0 0.0
    %320 = vmatpush1.msra.mxu0 0.0
    %321 = vmatprep.subr.mxu0 0.0
    %322 = vmatpush1.msra.mxu0 0.0
    %323 = vmatprep.mubr.f32.mxu0 0.0
    %324 = vmatmul.mubr.f32.gmra.mrb[0].mxu0 %v148
    %v325 = vpop.f32.mrb[0].mxu0
    %v326 = vadd.f32 %v257, %v325
    %v327 = vpop.f32.mrb[0].mxu0
    %328 = vmatprep.mubr.f32.mxu0 0.0
    %329 = vmatmul.mubr.f32.gmra.mrb[0].mxu0 %v151
    %v330 = vpop.f32.mrb[0].mxu0
    %v331 = vadd.f32 %v257, %v330
    %v332 = vpop.f32.mrb[0].mxu0
    %333 = vmatprep.mubr.f32.mxu0 0.0
    %334 = vmatmul.mubr.f32.gmra.mrb[0].mxu0 %v154
    %v335 = vpop.f32.mrb[0].mxu0
    %v336 = vadd.f32 %v257, %v335
    %v337 = vpop.f32.mrb[0].mxu0
    %338 = vmatprep.mubr.f32.mxu0 0.0
    %339 = vmatmul.mubr.f32.gmra.mrb[0].mxu0 %v157
    %v340 = vpop.f32.mrb[0].mxu0
    %v341 = vadd.f32 %v257, %v340
    %v342 = vpop.f32.mrb[0].mxu0
    %343 = vdwg.mxu0
    %v344 = vld [vmem:[#allocation8] sm:$0xff]
    %v345 = vld [vmem:[#allocation8 + $0x8] sm:$0xff]
    %v346 = vld [vmem:[#allocation8 + $0x10] sm:$0xff]
    %v347 = vld [vmem:[#allocation8 + $0x18] sm:$0xff]
    %v348 = vld [vmem:[#allocation8 + $0x20] sm:$0xff]
    %v349 = vld [vmem:[#allocation8 + $0x28] sm:$0xff]
    %v350 = vld [vmem:[#allocation8 + $0x30] sm:$0xff]
    %v351 = vld [vmem:[#allocation8 + $0x38] sm:$0xff]
    %v352 = vld [vmem:[#allocation10] sm:$0x1]
    %v354 = vlaneseq
    %v355 = vshrl.u32 %v354, 7
    %v356 = vsub.s32 0, %v355
    %v357 = vrot.slane %v352, %v356
    %359 = vmatprep.subr.mxu0 0.0
    %360 = vmatpush1.msra.mxu0 %v344
    %361 = vmatprep.subr.mxu0 0.0
    %362 = vmatpush1.msra.mxu0 %v345
    %363 = vmatprep.subr.mxu0 0.0
    %364 = vmatpush1.msra.mxu0 %v346
    %365 = vmatprep.subr.mxu0 0.0
    %366 = vmatpush1.msra.mxu0 %v347
    %367 = vmatprep.subr.mxu0 0.0
    %368 = vmatpush1.msra.mxu0 %v348
    %369 = vmatprep.subr.mxu0 0.0
    %370 = vmatpush1.msra.mxu0 %v349
    %371 = vmatprep.subr.mxu0 0.0
    %372 = vmatpush1.msra.mxu0 %v350
    %373 = vmatprep.subr.mxu0 0.0
    %374 = vmatpush1.msra.mxu0 %v351
    %375 = vmatprep.subr.mxu0 0.0
    %376 = vmatpush1.msra.mxu0 0.0
    %377 = vmatprep.subr.mxu0 0.0
    %378 = vmatpush1.msra.mxu0 0.0
    %379 = vmatprep.subr.mxu0 0.0
    %380 = vmatpush1.msra.mxu0 0.0
    %381 = vmatprep.subr.mxu0 0.0
    %382 = vmatpush1.msra.mxu0 0.0
    %383 = vmatprep.subr.mxu0 0.0
    %384 = vmatpush1.msra.mxu0 0.0
    %385 = vmatprep.subr.mxu0 0.0
    %386 = vmatpush1.msra.mxu0 0.0
    %387 = vmatprep.subr.mxu0 0.0
    %388 = vmatpush1.msra.mxu0 0.0
    %389 = vmatprep.subr.mxu0 0.0
    %390 = vmatpush1.msra.mxu0 0.0
    %391 = vmatprep.subr.mxu0 0.0
    %392 = vmatpush1.msra.mxu0 0.0
    %393 = vmatprep.subr.mxu0 0.0
    %394 = vmatpush1.msra.mxu0 0.0
    %395 = vmatprep.subr.mxu0 0.0
    %396 = vmatpush1.msra.mxu0 0.0
    %397 = vmatprep.subr.mxu0 0.0
    %398 = vmatpush1.msra.mxu0 0.0
    %399 = vmatprep.subr.mxu0 0.0
    %400 = vmatpush1.msra.mxu0 0.0
    %401 = vmatprep.subr.mxu0 0.0
    %402 = vmatpush1.msra.mxu0 0.0
    %403 = vmatprep.subr.mxu0 0.0
    %404 = vmatpush1.msra.mxu0 0.0
    %405 = vmatprep.subr.mxu0 0.0
    %406 = vmatpush1.msra.mxu0 0.0
    %407 = vmatprep.subr.mxu0 0.0
    %408 = vmatpush1.msra.mxu0 0.0
    %409 = vmatprep.subr.mxu0 0.0
    %410 = vmatpush1.msra.mxu0 0.0
    %411 = vmatprep.subr.mxu0 0.0
    %412 = vmatpush1.msra.mxu0 0.0
    %413 = vmatprep.subr.mxu0 0.0
    %414 = vmatpush1.msra.mxu0 0.0
    %415 = vmatprep.subr.mxu0 0.0
    %416 = vmatpush1.msra.mxu0 0.0
    %417 = vmatprep.subr.mxu0 0.0
    %418 = vmatpush1.msra.mxu0 0.0
    %419 = vmatprep.subr.mxu0 0.0
    %420 = vmatpush1.msra.mxu0 0.0
    %421 = vmatprep.subr.mxu0 0.0
    %422 = vmatpush1.msra.mxu0 0.0
    %423 = vmatprep.mubr.f32.mxu0 0.0
    %424 = vmatmul.mubr.f32.gmra.mrb[0].mxu0 %v148
    %v425 = vpop.f32.mrb[0].mxu0
    %v426 = vadd.f32 %v357, %v425
    %v427 = vpop.f32.mrb[0].mxu0
    %428 = vmatprep.mubr.f32.mxu0 0.0
    %429 = vmatmul.mubr.f32.gmra.mrb[0].mxu0 %v151
    %v430 = vpop.f32.mrb[0].mxu0
    %v431 = vadd.f32 %v357, %v430
    %v432 = vpop.f32.mrb[0].mxu0
    %433 = vmatprep.mubr.f32.mxu0 0.0
    %434 = vmatmul.mubr.f32.gmra.mrb[0].mxu0 %v154
    %v435 = vpop.f32.mrb[0].mxu0
    %v436 = vadd.f32 %v357, %v435
    %v437 = vpop.f32.mrb[0].mxu0
    %438 = vmatprep.mubr.f32.mxu0 0.0
    %439 = vmatmul.mubr.f32.gmra.mrb[0].mxu0 %v157
    %v440 = vpop.f32.mrb[0].mxu0
    %v441 = vadd.f32 %v357, %v440
    %v442 = vpop.f32.mrb[0].mxu0
    %443 = vdwg.mxu0
    %v445 = vsel %vm146, %v226, 0
    %v448 = vsel %vm146, %v231, 0
    %v451 = vsel %vm146, %v236, 0
    %v454 = vsel %vm146, %v241, 0
    %v457 = vsel %vm146, %v326, 0
    %v460 = vsel %vm146, %v331, 0
    %v463 = vsel %vm146, %v336, 0
    %v466 = vsel %vm146, %v341, 0
    %468 = vmatprep.subr.mxu0 0.0
    %469 = vmatpush1.xpose.msra.mxu0 %v457
    %470 = vmatprep.subr.mxu0 0.0
    %471 = vmatpush1.xpose.msra.mxu0 %v460
    %472 = vmatprep.subr.mxu0 0.0
    %473 = vmatpush1.xpose.msra.mxu0 %v463
    %474 = vmatprep.subr.mxu0 0.0
    %475 = vmatpush1.xpose.msra.mxu0 %v466
    %476 = vmatprep.subr.mxu0 0.0
    %477 = vmatpush1.xpose.msra.mxu0 0.0
    %478 = vmatprep.subr.mxu0 0.0
    %479 = vmatpush1.xpose.msra.mxu0 0.0
    %480 = vmatprep.subr.mxu0 0.0
    %481 = vmatpush1.xpose.msra.mxu0 0.0
    %482 = vmatprep.subr.mxu0 0.0
    %483 = vmatpush1.xpose.msra.mxu0 0.0
    %484 = vmatprep.subr.mxu0 0.0
    %485 = vmatpush1.xpose.msra.mxu0 0.0
    %486 = vmatprep.subr.mxu0 0.0
    %487 = vmatpush1.xpose.msra.mxu0 0.0
    %488 = vmatprep.subr.mxu0 0.0
    %489 = vmatpush1.xpose.msra.mxu0 0.0
    %490 = vmatprep.subr.mxu0 0.0
    %491 = vmatpush1.xpose.msra.mxu0 0.0
    %492 = vmatprep.subr.mxu0 0.0
    %493 = vmatpush1.xpose.msra.mxu0 0.0
    %494 = vmatprep.subr.mxu0 0.0
    %495 = vmatpush1.xpose.msra.mxu0 0.0
    %496 = vmatprep.subr.mxu0 0.0
    %497 = vmatpush1.xpose.msra.mxu0 0.0
    %498 = vmatprep.subr.mxu0 0.0
    %499 = vmatpush1.xpose.msra.mxu0 0.0
    %500 = vmatprep.subr.mxu0 0.0
    %501 = vmatpush1.xpose.msra.mxu0 0.0
    %502 = vmatprep.subr.mxu0 0.0
    %503 = vmatpush1.xpose.msra.mxu0 0.0
    %504 = vmatprep.subr.mxu0 0.0
    %505 = vmatpush1.xpose.msra.mxu0 0.0
    %506 = vmatprep.subr.mxu0 0.0
    %507 = vmatpush1.xpose.msra.mxu0 0.0
    %508 = vmatprep.subr.mxu0 0.0
    %509 = vmatpush1.xpose.msra.mxu0 0.0
    %510 = vmatprep.subr.mxu0 0.0
    %511 = vmatpush1.xpose.msra.mxu0 0.0
    %512 = vmatprep.subr.mxu0 0.0
    %513 = vmatpush1.xpose.msra.mxu0 0.0
    %514 = vmatprep.subr.mxu0 0.0
    %515 = vmatpush1.xpose.msra.mxu0 0.0
    %516 = vmatprep.subr.mxu0 0.0
    %517 = vmatpush1.xpose.msra.mxu0 0.0
    %518 = vmatprep.subr.mxu0 0.0
    %519 = vmatpush1.xpose.msra.mxu0 0.0
    %520 = vmatprep.subr.mxu0 0.0
    %521 = vmatpush1.xpose.msra.mxu0 0.0
    %522 = vmatprep.subr.mxu0 0.0
    %523 = vmatpush1.xpose.msra.mxu0 0.0
    %524 = vmatprep.subr.mxu0 0.0
    %525 = vmatpush1.xpose.msra.mxu0 0.0
    %526 = vmatprep.subr.mxu0 0.0
    %527 = vmatpush1.xpose.msra.mxu0 0.0
    %528 = vmatprep.subr.mxu0 0.0
    %529 = vmatpush1.xpose.msra.mxu0 0.0
    %530 = vmatprep.subr.mxu0 0.0
    %531 = vmatpush1.xpose.msra.mxu0 0.0
    %532 = vmatprep.mubr.f32.mxu0 0.0
    %533 = vmatmul.mubr.f32.gmra.mrb[0].mxu0 %v445
    %v534 = vpop.f32.mrb[0].mxu0
    %v535 = vadd.f32 0.0, %v534
    %v536 = vpop.f32.mrb[0].mxu0
    %537 = vmatprep.mubr.f32.mxu0 0.0
    %538 = vmatmul.mubr.f32.gmra.mrb[0].mxu0 %v448
    %v539 = vpop.f32.mrb[0].mxu0
    %v540 = vadd.f32 0.0, %v539
    %v541 = vpop.f32.mrb[0].mxu0
    %542 = vmatprep.mubr.f32.mxu0 0.0
    %543 = vmatmul.mubr.f32.gmra.mrb[0].mxu0 %v451
    %v544 = vpop.f32.mrb[0].mxu0
    %v545 = vadd.f32 0.0, %v544
    %v546 = vpop.f32.mrb[0].mxu0
    %547 = vmatprep.mubr.f32.mxu0 0.0
    %548 = vmatmul.mubr.f32.gmra.mrb[0].mxu0 %v454
    %v549 = vpop.f32.mrb[0].mxu0
    %v550 = vadd.f32 0.0, %v549
    %v551 = vpop.f32.mrb[0].mxu0
    %552 = vdwg.mxu0
    %v553 = vmul.f32 %v535, 0.125
    %v554 = vmul.f32 %v540, 0.125
    %v555 = vmul.f32 %v545, 0.125
    %v556 = vmul.f32 %v550, 0.125
    %v557 = vld [vmem:[%s9] sm:$0xff]
    %v558 = vld [vmem:[%s9 + $0x8] sm:$0xff]
    %v559 = vld [vmem:[%s9 + $0x10] sm:$0xff]
    %v560 = vld [vmem:[%s9 + $0x18] sm:$0xff]
    %v561 = vadd.f32 %v553, %v557
    %v562 = vadd.f32 %v554, %v558
    %v563 = vadd.f32 %v555, %v559
    %v564 = vadd.f32 %v556, %v560
    %vm565 = vcmask 261120
    %v566 = vsel %vm565, %v561, -inf
    %567 = vmax.xlane.f32.xlu0 %v566
    %v568 = vpop.xlane.xlu0 %567
    %v569 = vsel %vm565, %v562, -inf
    %570 = vmax.xlane.f32.xlu0 %v569
    %v571 = vpop.xlane.xlu0 %570
    %v572 = vsel %vm565, %v563, -inf
    %573 = vmax.xlane.f32.xlu0 %v572
    %v574 = vpop.xlane.xlu0 %573
    %v575 = vsel %vm565, %v564, -inf
    %576 = vmax.xlane.f32.xlu0 %v575
    %v577 = vpop.xlane.xlu0 %576
    %v578 = vsub.f32 %v561, %v568
    %v579 = vsub.f32 %v562, %v571
    %v580 = vsub.f32 %v563, %v574
    %v581 = vsub.f32 %v564, %v577
    %v582 = vmul.f32 %v578, 1.442695
    %v583 = vpow.pop %v582
    %v584 = vmul.f32 %v579, 1.442695
    %v585 = vpow.pop %v584
    %v586 = vmul.f32 %v580, 1.442695
    %v587 = vpow.pop %v586
    %v588 = vmul.f32 %v581, 1.442695
    %v589 = vpow.pop %v588
    %v590 = vsel %vm565, %v583, 0.0
    %591 = vadd.xlane.f32.xlu0 %v590
    %v592 = vpop.xlane.xlu0 %591
    %v593 = vsel %vm565, %v585, 0.0
    %594 = vadd.xlane.f32.xlu0 %v593
    %v595 = vpop.xlane.xlu0 %594
    %v596 = vsel %vm565, %v587, 0.0
    %597 = vadd.xlane.f32.xlu0 %v596
    %v598 = vpop.xlane.xlu0 %597
    %v599 = vsel %vm565, %v589, 0.0
    %600 = vadd.xlane.f32.xlu0 %v599
    %v601 = vpop.xlane.xlu0 %600
    %v602 = vrcp.pop %v592
    %v603 = vmul.f32 1.0, %v602
    %v604 = vrcp.pop %v595
    %v605 = vmul.f32 1.0, %v604
    %v606 = vrcp.pop %v598
    %v607 = vmul.f32 1.0, %v606
    %v608 = vrcp.pop %v601
    %v609 = vmul.f32 1.0, %v608
    %v610 = vmul.f32 %v583, %v603
    %v611 = vmul.f32 %v585, %v605
    %v612 = vmul.f32 %v587, %v607
    %v613 = vmul.f32 %v589, %v609
    %v615 = vsel %vm565, %v610, 0
    %v618 = vsel %vm565, %v611, 0
    %v621 = vsel %vm565, %v612, 0
    %v624 = vsel %vm565, %v613, 0
    %626 = vmatprep.subr.mxu0 0.0
    %627 = vmatpush1.msra.mxu0 %v426
    %628 = vmatprep.subr.mxu0 0.0
    %629 = vmatpush1.msra.mxu0 %v431
    %630 = vmatprep.subr.mxu0 0.0
    %631 = vmatpush1.msra.mxu0 %v436
    %632 = vmatprep.subr.mxu0 0.0
    %633 = vmatpush1.msra.mxu0 %v441
    %634 = vmatprep.subr.mxu0 0.0
    %635 = vmatpush1.msra.mxu0 0.0
    %636 = vmatprep.subr.mxu0 0.0
    %637 = vmatpush1.msra.mxu0 0.0
    %638 = vmatprep.subr.mxu0 0.0
    %639 = vmatpush1.msra.mxu0 0.0
    %640 = vmatprep.subr.mxu0 0.0
    %641 = vmatpush1.msra.mxu0 0.0
    %642 = vmatprep.subr.mxu0 0.0
    %643 = vmatpush1.msra.mxu0 0.0
    %644 = vmatprep.subr.mxu0 0.0
    %645 = vmatpush1.msra.mxu0 0.0
    %646 = vmatprep.subr.mxu0 0.0
    %647 = vmatpush1.msra.mxu0 0.0
    %648 = vmatprep.subr.mxu0 0.0
    %649 = vmatpush1.msra.mxu0 0.0
    %650 = vmatprep.subr.mxu0 0.0
    %651 = vmatpush1.msra.mxu0 0.0
    %652 = vmatprep.subr.mxu0 0.0
    %653 = vmatpush1.msra.mxu0 0.0
    %654 = vmatprep.subr.mxu0 0.0
    %655 = vmatpush1.msra.mxu0 0.0
    %656 = vmatprep.subr.mxu0 0.0
    %657 = vmatpush1.msra.mxu0 0.0
    %658 = vmatprep.subr.mxu0 0.0
    %659 = vmatpush1.msra.mxu0 0.0
    %660 = vmatprep.subr.mxu0 0.0
    %661 = vmatpush1.msra.mxu0 0.0
    %662 = vmatprep.subr.mxu0 0.0
    %663 = vmatpush1.msra.mxu0 0.0
    %664 = vmatprep.subr.mxu0 0.0
    %665 = vmatpush1.msra.mxu0 0.0
    %666 = vmatprep.subr.mxu0 0.0
    %667 = vmatpush1.msra.mxu0 0.0
    %668 = vmatprep.subr.mxu0 0.0
    %669 = vmatpush1.msra.mxu0 0.0
    %670 = vmatprep.subr.mxu0 0.0
    %671 = vmatpush1.msra.mxu0 0.0
    %672 = vmatprep.subr.mxu0 0.0
    %673 = vmatpush1.msra.mxu0 0.0
    %674 = vmatprep.subr.mxu0 0.0
    %675 = vmatpush1.msra.mxu0 0.0
    %676 = vmatprep.subr.mxu0 0.0
    %677 = vmatpush1.msra.mxu0 0.0
    %678 = vmatprep.subr.mxu0 0.0
    %679 = vmatpush1.msra.mxu0 0.0
    %680 = vmatprep.subr.mxu0 0.0
    %681 = vmatpush1.msra.mxu0 0.0
    %682 = vmatprep.subr.mxu0 0.0
    %683 = vmatpush1.msra.mxu0 0.0
    %684 = vmatprep.subr.mxu0 0.0
    %685 = vmatpush1.msra.mxu0 0.0
    %686 = vmatprep.subr.mxu0 0.0
    %687 = vmatpush1.msra.mxu0 0.0
    %688 = vmatprep.subr.mxu0 0.0
    %689 = vmatpush1.msra.mxu0 0.0
    %690 = vmatprep.mubr.f32.mxu0 0.0
    %691 = vmatmul.mubr.f32.gmra.mrb[0].mxu0 %v615
    %v692 = vpop.f32.mrb[0].mxu0
    %v693 = vadd.f32 0.0, %v692
    %v694 = vpop.f32.mrb[0].mxu0
    %695 = vmatprep.mubr.f32.mxu0 0.0
    %696 = vmatmul.mubr.f32.gmra.mrb[0].mxu0 %v618
    %v697 = vpop.f32.mrb[0].mxu0
    %v698 = vadd.f32 0.0, %v697
    %v699 = vpop.f32.mrb[0].mxu0
    %700 = vmatprep.mubr.f32.mxu0 0.0
    %701 = vmatmul.mubr.f32.gmra.mrb[0].mxu0 %v621
    %v702 = vpop.f32.mrb[0].mxu0
    %v703 = vadd.f32 0.0, %v702
    %v704 = vpop.f32.mrb[0].mxu0
    %705 = vmatprep.mubr.f32.mxu0 0.0
    %706 = vmatmul.mubr.f32.gmra.mrb[0].mxu0 %v624
    %v707 = vpop.f32.mrb[0].mxu0
    %v708 = vadd.f32 0.0, %v707
    %v709 = vpop.f32.mrb[0].mxu0
    %710 = vdwg.mxu0
    %v711 = vld [vmem:[#allocation11] sm:$0xff]
    %v712 = vld [vmem:[#allocation11 + $0x8] sm:$0xff]
    %v713 = vld [vmem:[#allocation11 + $0x10] sm:$0xff]
    %v714 = vld [vmem:[#allocation11 + $0x18] sm:$0xff]
    %v715 = vld [vmem:[#allocation11 + $0x20] sm:$0xff]
    %v716 = vld [vmem:[#allocation11 + $0x28] sm:$0xff]
    %v717 = vld [vmem:[#allocation11 + $0x30] sm:$0xff]
    %v718 = vld [vmem:[#allocation11 + $0x38] sm:$0xff]
    %v719 = vld [vmem:[#allocation13] sm:$0x1]
    %v721 = vlaneseq
    %v722 = vshrl.u32 %v721, 7
    %v723 = vsub.s32 0, %v722
    %v724 = vrot.slane %v719, %v723
    %v727 = vsel %vm146, %v693, 0
    %v730 = vsel %vm146, %v698, 0
    %v733 = vsel %vm146, %v703, 0
    %v736 = vsel %vm146, %v708, 0
    %738 = vmatprep.subr.mxu0 0.0
    %739 = vmatpush1.msra.mxu0 %v711
    %740 = vmatprep.subr.mxu0 0.0
    %741 = vmatpush1.msra.mxu0 %v712
    %742 = vmatprep.subr.mxu0 0.0
    %743 = vmatpush1.msra.mxu0 %v713
    %744 = vmatprep.subr.mxu0 0.0
    %745 = vmatpush1.msra.mxu0 %v714
    %746 = vmatprep.subr.mxu0 0.0
    %747 = vmatpush1.msra.mxu0 %v715
    %748 = vmatprep.subr.mxu0 0.0
    %749 = vmatpush1.msra.mxu0 %v716
    %750 = vmatprep.subr.mxu0 0.0
    %751 = vmatpush1.msra.mxu0 %v717
    %752 = vmatprep.subr.mxu0 0.0
    %753 = vmatpush1.msra.mxu0 %v718
    %754 = vmatprep.subr.mxu0 0.0
    %755 = vmatpush1.msra.mxu0 0.0
    %756 = vmatprep.subr.mxu0 0.0
    %757 = vmatpush1.msra.mxu0 0.0
    %758 = vmatprep.subr.mxu0 0.0
    %759 = vmatpush1.msra.mxu0 0.0
    %760 = vmatprep.subr.mxu0 0.0
    %761 = vmatpush1.msra.mxu0 0.0
    %762 = vmatprep.subr.mxu0 0.0
    %763 = vmatpush1.msra.mxu0 0.0
    %764 = vmatprep.subr.mxu0 0.0
    %765 = vmatpush1.msra.mxu0 0.0
    %766 = vmatprep.subr.mxu0 0.0
    %767 = vmatpush1.msra.mxu0 0.0
    %768 = vmatprep.subr.mxu0 0.0
    %769 = vmatpush1.msra.mxu0 0.0
    %770 = vmatprep.subr.mxu0 0.0
    %771 = vmatpush1.msra.mxu0 0.0
    %772 = vmatprep.subr.mxu0 0.0
    %773 = vmatpush1.msra.mxu0 0.0
    %774 = vmatprep.subr.mxu0 0.0
    %775 = vmatpush1.msra.mxu0 0.0
    %776 = vmatprep.subr.mxu0 0.0
    %777 = vmatpush1.msra.mxu0 0.0
    %778 = vmatprep.subr.mxu0 0.0
    %779 = vmatpush1.msra.mxu0 0.0
    %780 = vmatprep.subr.mxu0 0.0
    %781 = vmatpush1.msra.mxu0 0.0
    %782 = vmatprep.subr.mxu0 0.0
    %783 = vmatpush1.msra.mxu0 0.0
    %784 = vmatprep.subr.mxu0 0.0
    %785 = vmatpush1.msra.mxu0 0.0
    %786 = vmatprep.subr.mxu0 0.0
    %787 = vmatpush1.msra.mxu0 0.0
    %788 = vmatprep.subr.mxu0 0.0
    %789 = vmatpush1.msra.mxu0 0.0
    %790 = vmatprep.subr.mxu0 0.0
    %791 = vmatpush1.msra.mxu0 0.0
    %792 = vmatprep.subr.mxu0 0.0
    %793 = vmatpush1.msra.mxu0 0.0
    %794 = vmatprep.subr.mxu0 0.0
    %795 = vmatpush1.msra.mxu0 0.0
    %796 = vmatprep.subr.mxu0 0.0
    %797 = vmatpush1.msra.mxu0 0.0
    %798 = vmatprep.subr.mxu0 0.0
    %799 = vmatpush1.msra.mxu0 0.0
    %800 = vmatprep.subr.mxu0 0.0
    %801 = vmatpush1.msra.mxu0 0.0
    %802 = vmatprep.mubr.f32.mxu0 0.0
    %803 = vmatmul.mubr.f32.gmra.mrb[0].mxu0 %v727
    %v804 = vpop.f32.mrb[0].mxu0
    %v805 = vadd.f32 %v724, %v804
    %v806 = vpop.f32.mrb[0].mxu0
    %807 = vmatprep.mubr.f32.mxu0 0.0
    %808 = vmatmul.mubr.f32.gmra.mrb[0].mxu0 %v730
    %v809 = vpop.f32.mrb[0].mxu0
    %v810 = vadd.f32 %v724, %v809
    %v811 = vpop.f32.mrb[0].mxu0
    %812 = vmatprep.mubr.f32.mxu0 0.0
    %813 = vmatmul.mubr.f32.gmra.mrb[0].mxu0 %v733
    %v814 = vpop.f32.mrb[0].mxu0
    %v815 = vadd.f32 %v724, %v814
    %v816 = vpop.f32.mrb[0].mxu0
    %817 = vmatprep.mubr.f32.mxu0 0.0
    %818 = vmatmul.mubr.f32.gmra.mrb[0].mxu0 %v736
    %v819 = vpop.f32.mrb[0].mxu0
    %v820 = vadd.f32 %v724, %v819
    %v821 = vpop.f32.mrb[0].mxu0
    %822 = vdwg.mxu0
    %823 = vst.msk [vmem:[#allocation14] sm:$0xff] %vm146, %v805
    %824 = vst.msk [vmem:[#allocation14 + $0x8] sm:$0xff] %vm146, %v810
    %825 = vst.msk [vmem:[#allocation14 + $0x10] sm:$0xff] %vm146, %v815
    %826 = vst.msk [vmem:[#allocation14 + $0x18] sm:$0xff] %vm146, %v820
    // Predicated region
    $region70: #{tpu_custom_call.1} parent=1 // pred_check
      _
    $region71: #{tpu_custom_call.1} parent=1 // pred_check_branch
      %828 = sbr.rel (0) target = $region73
    $region72: #{tpu_custom_call.1} parent=1 // pred_region
      %s830 = ssub.s32 512, 512
      %831 = vsyncadd [#allocation4], %s830
      %s832 = sshll.u32 [#allocation14], 4
      %s833 = int_to_ptr.vmem [resolvable:$true] %s832
      %838 = dma.vmem_to_hbm [thread:$0]  %s833, 512, %s10, [#allocation4], 128, 128, 8
    $region73: #{tpu_custom_call.1} parent=1 // pred_fallthru
      _
    // Predicated region
    $region74: #{tpu_custom_call.1} parent=1 // pred_check
      _
    $region75: #{tpu_custom_call.1} parent=1 // pred_check_branch
      %840 = sbr.rel (0) target = $region77
    $region76: #{tpu_custom_call.1} parent=1 // pred_region
      %841 = dma.done [#allocation4], 512
    $region77: #{tpu_custom_call.1} parent=1 // pred_fallthru
      _
    %842 = vsyncpa [#allocation3], 1
    %843 = vsyncpa [#allocation6], 1
    %844 = vsyncpa [#allocation9], 1
    %845 = vsyncpa [#allocation12], 1
    %846 = vsyncpa [#allocation4], 1

</llo_original>
